<compile_context>
chip_gen: v5e
topology: v5e:2x2
jax: 0.10.0
libtpu: 0.0.40
codegen_flags: <defaults>
</compile_context>

<pallas_src>
import jax
import jax.numpy as jnp
from jax import lax
from jax.experimental import pallas as pl
from jax.experimental.pallas import tpu as pltpu

_QK_PAD = 8  # q/k channel count (C//8) zero-padded up to one sublane group


def _self_attn_kernel(gamma_ref, x_ref, xq_ref, w_ref, b_ref, o_ref):
    """One (batch, query-block) grid step.

    x_ref  : (1, C, N)      full spatial extent (keys / values)
    xq_ref : (1, C, NQ)     this step's query columns
    w_ref  : (8+8+C, C)     fused [Wq_pad; Wk_pad; Wv] 1x1-conv+BN weights
    b_ref  : (8+8+C, 1)     fused biases
    o_ref  : (1, C, NQ)
    """
    x = x_ref[0]                      # (C, N)
    xq = xq_ref[0]                    # (C, NQ)
    w = w_ref[...]
    b = b_ref[...]

    # ---- fused projections (channel-mixing matmuls on the MXU) -------------
    # K and V need every spatial position; Q only needs this block's columns.
    kv = jnp.dot(w[_QK_PAD:], x, preferred_element_type=jnp.float32) + b[_QK_PAD:]
    k = kv[:_QK_PAD]                  # (8, N)   rows >= C//8 are exactly zero
    v = kv[_QK_PAD:]                  # (C, N)
    q = (jnp.dot(w[:_QK_PAD], xq, preferred_element_type=jnp.float32)
         + b[:_QK_PAD])               # (8, NQ)

    # ---- scores = Q^T K without materializing a transpose -------------------
    s = lax.dot_general(q, k, (((0,), (0,)), ((), ())),
                        preferred_element_type=jnp.float32)        # (NQ, N)

    # ---- stable softmax over keys; divide on the EUP ------------------------
    s = s - jnp.max(s, axis=-1, keepdims=True)
    p = jnp.exp(s)
    a = p * pl.reciprocal(jnp.sum(p, axis=-1, keepdims=True), approx=True)

    # ---- out block = V @ A^T (contract key axis, no transpose) --------------
    # bf16 operands + f32 accumulation: this is the only N-deep contraction.
    o = lax.dot_general(v.astype(jnp.bfloat16), a.astype(jnp.bfloat16),
                        (((1,), (1,)), ((), ())),
                        preferred_element_type=jnp.float32)        # (C, NQ)

    o_ref[0] = gamma_ref[0, 0] * o + xq


def self_attn_pallas(x, wq, bq, wk, bk, wv, bv, gamma, *, q_block=128):
    """x: (B, C, H, W) float32.  1x1-conv weights already have BN folded in."""
    B, C, H, W = x.shape
    N = H * W
    assert N % 128 == 0, "flattened spatial size must be lane-aligned"

    # Zero-pad the C//8-row query/key projections up to 8 rows and pack
    # [Wq; Wk; Wv] into a single channel-mixing weight + single bias so the
    # projection is done with sublane-aligned slices of one weight tile.
    def _pad_rows(wm, bm):
        wp = jnp.zeros((_QK_PAD, C), wm.dtype).at[: wm.shape[0]].set(wm)
        bp = jnp.zeros((_QK_PAD, 1), bm.dtype).at[: bm.shape[0]].set(bm)
        return wp, bp

    wq_p, bq_p = _pad_rows(wq, bq)
    wk_p, bk_p = _pad_rows(wk, bk)
    w_fused = jnp.concatenate([wq_p, wk_p, wv], axis=0)        # (8+8+C, C)
    b_fused = jnp.concatenate([bq_p, bk_p, bv], axis=0)        # (8+8+C, 1)
    c_pack = 2 * _QK_PAD + C

    xf = x.reshape(B, C, N)
    gamma_arr = jnp.reshape(gamma.astype(jnp.float32), (1, 1))

    # Query tiling: bounds the live (NQ, N) score tile and adds a second
    # parallel grid axis (v7x megacore).
    nq = q_block if (N % q_block == 0) else N
    n_qblocks = N // nq

    cost = pl.CostEstimate(
        flops=int(B * n_qblocks * 2 * (_QK_PAD + C) * C * N      # fused K/V proj
                  + B * 2 * _QK_PAD * C * N                      # Q proj
                  + B * 2 * _QK_PAD * N * N                      # Q^T K
                  + B * 2 * C * N * N),                          # V @ A^T
        transcendentals=int(B * N * N),
        bytes_accessed=int(4 * (B * C * N * (1 + n_qblocks)      # x reads
                                + c_pack * (C + 1)               # weights/bias
                                + B * C * N)),                   # output
    )

    out = pl.pallas_call(
        _self_attn_kernel,
        out_shape=jax.ShapeDtypeStruct((B, C, N), jnp.float32),
        grid_spec=pltpu.PrefetchScalarGridSpec(
            num_scalar_prefetch=0,
            grid=(B, n_qblocks),
            in_specs=[
                pl.BlockSpec(memory_space=pltpu.MemorySpace.SMEM),    # gamma
                pl.BlockSpec((1, C, N), lambda b, qb: (b, 0, 0)),     # x (K/V)
                pl.BlockSpec((1, C, nq), lambda b, qb: (b, 0, qb)),   # x (Q cols)
                pl.BlockSpec((c_pack, C), lambda b, qb: (0, 0)),      # W fused
                pl.BlockSpec((c_pack, 1), lambda b, qb: (0, 0)),      # b fused
            ],
            out_specs=pl.BlockSpec((1, C, nq), lambda b, qb: (b, 0, qb)),
        ),
        compiler_params=pltpu.CompilerParams(
            dimension_semantics=("parallel", "parallel")),
        cost_estimate=cost,
    )(gamma_arr, xf, xf, w_fused, b_fused)
    return out.reshape(B, C, H, W)


# ------------------------ parameter construction -------------------------

def _kaiming(key, out_c, in_c):
    std = (2.0 / in_c) ** 0.5
    return std * jax.random.normal(key, (out_c, in_c), jnp.float32)


def _bn_params(key, c):
    k1, k2, k3, k4 = jax.random.split(key, 4)
    weight = 1.0 + 0.1 * jax.random.normal(k1, (c,), jnp.float32)
    bias = 0.1 * jax.random.normal(k2, (c,), jnp.float32)
    mean = 0.1 * jax.random.normal(k3, (c,), jnp.float32)
    var = jnp.abs(jax.random.normal(k4, (c,), jnp.float32)) + 0.5
    return weight, bias, mean, var


def _fold_bn(w_conv, bn, eps=1e-5):
    g, beta, mu, var = bn
    scale = g / jnp.sqrt(var + eps)
    w = w_conv * scale[:, None]
    b = (beta - mu * scale)[:, None]          # (out_c, 1)
    return w, b


# ------------------------------- reference -------------------------------

def ref_forward(x, wq, bq, wk, bk, wv, bv, gamma):
    B, C, H, W = x.shape
    N = H * W
    xf = x.reshape(B, C, N)
    q = jnp.einsum('oc,bcn->bon', wq, xf) + bq[None]
    k = jnp.einsum('oc,bcn->bon', wk, xf) + bk[None]
    v = jnp.einsum('oc,bcn->bon', wv, xf) + bv[None]
    s = jnp.einsum('bqn,bqm->bnm', q, k)            # Q^T K
    a = jax.nn.softmax(s, axis=-1)
    o = jnp.einsum('bcn,bmn->bcm', v, a)            # V @ A^T
    return (gamma * o + xf).reshape(B, C, H, W)


if __name__ == "__main__":
    B, C, H, W = 2, 16, 16, 16
    Cq = C // 8

    key = jax.random.PRNGKey(0)
    (kx, kwq, kwk, kwv, kbq, kbk, kbv) = jax.random.split(key, 7)

    x = jax.random.normal(kx, (B, C, H, W), jnp.float32)

    wq_conv = _kaiming(kwq, Cq, C)
    wk_conv = _kaiming(kwk, Cq, C)
    wv_conv = _kaiming(kwv, C, C)

    wq, bq = _fold_bn(wq_conv, _bn_params(kbq, Cq))
    wk, bk = _fold_bn(wk_conv, _bn_params(kbk, Cq))
    wv, bv = _fold_bn(wv_conv, _bn_params(kbv, C))

    # PyTorch initializes gamma = 0 (output would equal x); use a nonzero
    # value here so the attention path actually contributes to the check.
    gamma = jnp.float32(0.5)

    out = self_attn_pallas(x, wq, bq, wk, bk, wv, bv, gamma)
    out = jax.block_until_ready(out)

    ref = ref_forward(x, wq, bq, wk, bk, wv, bv, gamma)
    assert out.shape == (B, C, H, W)
    # Tolerance accounts for the bf16 V@A^T MXU path (f32 accumulation) and
    # the EUP approximate-reciprocal softmax normalization.
    assert jnp.allclose(out, ref, atol=1e-2, rtol=1e-2), "mismatch vs reference"

    print("KERNEL_OK")
</pallas_src>

<mosaic_0001>
module attributes {stable_mosaic.version = 11 : i64} {
  func.func @_self_attn_kernel(%arg0: i32, %arg1: i32, %arg2: memref<1x1xf32, #tpu.memory_space<smem>>, %arg3: memref<1x16x256xf32, #tpu.memory_space<vmem>>, %arg4: memref<1x16x128xf32, #tpu.memory_space<vmem>>, %arg5: memref<32x16xf32, #tpu.memory_space<vmem>>, %arg6: memref<32x1xf32, #tpu.memory_space<vmem>>, %arg7: memref<1x16x128xf32, #tpu.memory_space<vmem>>) attributes {dimension_semantics = [#tpu.dimension_semantics<parallel>, #tpu.dimension_semantics<parallel>], iteration_bounds = array<i64: 2, 2>, scalar_prefetch = 0 : i64, scratch_operands = 0 : i64, tpu.core_type = #tpu.core_type<tc>, window_params = [{transform_indices = @transform_0, window_bounds = array<i64: 1, 1>}, {transform_indices = @transform_1, window_bounds = array<i64: 1, 16, 256>}, {transform_indices = @transform_2, window_bounds = array<i64: 1, 16, 128>}, {pipeline_mode = #tpu.pipeline_mode<synchronous>, transform_indices = @transform_3, window_bounds = array<i64: 32, 16>}, {pipeline_mode = #tpu.pipeline_mode<synchronous>, transform_indices = @transform_4, window_bounds = array<i64: 32, 1>}, {transform_indices = @transform_5, window_bounds = array<i64: 1, 16, 128>}]} {
    %c0 = arith.constant 0 : index
    %c0_0 = arith.constant 0 : index
    %c0_1 = arith.constant 0 : index
    %0 = vector.load %arg3[%c0, %c0_0, %c0_1] : memref<1x16x256xf32, #tpu.memory_space<vmem>>, vector<1x16x256xf32>
    %1 = vector.shape_cast %0 : vector<1x16x256xf32> to vector<16x256xf32>
    %c0_2 = arith.constant 0 : index
    %c0_3 = arith.constant 0 : index
    %c0_4 = arith.constant 0 : index
    %2 = vector.load %arg4[%c0_2, %c0_3, %c0_4] : memref<1x16x128xf32, #tpu.memory_space<vmem>>, vector<1x16x128xf32>
    %3 = vector.shape_cast %2 : vector<1x16x128xf32> to vector<16x128xf32>
    %c0_5 = arith.constant 0 : index
    %c0_6 = arith.constant 0 : index
    %4 = vector.load %arg5[%c0_5, %c0_6] : memref<32x16xf32, #tpu.memory_space<vmem>>, vector<32x16xf32>
    %c0_7 = arith.constant 0 : index
    %c0_8 = arith.constant 0 : index
    %5 = vector.load %arg6[%c0_7, %c0_8] : memref<32x1xf32, #tpu.memory_space<vmem>>, vector<32x1xf32>
    %6 = vector.extract_strided_slice %4 {offsets = [8, 0], sizes = [24, 16], strides = [1, 1]} : vector<32x16xf32> to vector<24x16xf32>
    %cst = arith.constant dense<0.000000e+00> : vector<24x256xf32>
    %7 = tpu.matmul %6, %1, %cst {dimension_numbers = #tpu.dot_dimension_numbers<[1], [0], [0], [1], [0, 0, 1, 1], [], []>} : vector<24x16xf32>, vector<16x256xf32>, vector<24x256xf32> -> vector<24x256xf32>
    %8 = vector.extract_strided_slice %5 {offsets = [8, 0], sizes = [24, 1], strides = [1, 1]} : vector<32x1xf32> to vector<24x1xf32>
    %9 = vector.broadcast %8 : vector<24x1xf32> to vector<24x256xf32>
    %10 = arith.addf %7, %9 : vector<24x256xf32>
    %11 = vector.extract_strided_slice %10 {offsets = [0, 0], sizes = [8, 256], strides = [1, 1]} : vector<24x256xf32> to vector<8x256xf32>
    %12 = vector.extract_strided_slice %10 {offsets = [8, 0], sizes = [16, 256], strides = [1, 1]} : vector<24x256xf32> to vector<16x256xf32>
    %13 = vector.extract_strided_slice %4 {offsets = [0, 0], sizes = [8, 16], strides = [1, 1]} : vector<32x16xf32> to vector<8x16xf32>
    %cst_9 = arith.constant dense<0.000000e+00> : vector<8x128xf32>
    %14 = tpu.matmul %13, %3, %cst_9 {dimension_numbers = #tpu.dot_dimension_numbers<[1], [0], [0], [1], [0, 0, 1, 1], [], []>} : vector<8x16xf32>, vector<16x128xf32>, vector<8x128xf32> -> vector<8x128xf32>
    %15 = vector.extract_strided_slice %5 {offsets = [0, 0], sizes = [8, 1], strides = [1, 1]} : vector<32x1xf32> to vector<8x1xf32>
    %16 = vector.broadcast %15 : vector<8x1xf32> to vector<8x128xf32>
    %17 = arith.addf %14, %16 : vector<8x128xf32>
    %cst_10 = arith.constant dense<0.000000e+00> : vector<128x256xf32>
    %18 = tpu.matmul %17, %11, %cst_10 {dimension_numbers = #tpu.dot_dimension_numbers<[0], [0], [1], [1], [0, 1, 1, 1], [], []>} : vector<8x128xf32>, vector<8x256xf32>, vector<128x256xf32> -> vector<128x256xf32>
    %cst_11 = arith.constant dense<0xFF800000> : vector<128xf32>
    %19 = vector.multi_reduction <maximumf>, %18, %cst_11 [1] : vector<128x256xf32> to vector<128xf32>
    %20 = vector.shape_cast %19 : vector<128xf32> to vector<128x1xf32>
    %21 = vector.broadcast %20 : vector<128x1xf32> to vector<128x256xf32>
    %22 = arith.subf %18, %21 : vector<128x256xf32>
    %23 = math.exp %22 : vector<128x256xf32>
    %cst_12 = arith.constant dense<0.000000e+00> : vector<128xf32>
    %24 = vector.multi_reduction <add>, %23, %cst_12 [1] : vector<128x256xf32> to vector<128xf32>
    %25 = vector.shape_cast %24 : vector<128xf32> to vector<128x1xf32>
    %26 = tpu.reciprocal %25 {approx = true} : vector<128x1xf32> -> vector<128x1xf32>
    %27 = vector.broadcast %26 : vector<128x1xf32> to vector<128x256xf32>
    %28 = arith.mulf %23, %27 : vector<128x256xf32>
    %29 = arith.truncf %12 : vector<16x256xf32> to vector<16x256xbf16>
    %30 = arith.truncf %28 : vector<128x256xf32> to vector<128x256xbf16>
    %cst_13 = arith.constant dense<0.000000e+00> : vector<16x128xf32>
    %31 = tpu.matmul %29, %30, %cst_13 {dimension_numbers = #tpu.dot_dimension_numbers<[1], [1], [0], [0], [0, 0, 1, 0], [], []>} : vector<16x256xbf16>, vector<128x256xbf16>, vector<16x128xf32> -> vector<16x128xf32>
    %c0_14 = arith.constant 0 : index
    %c0_15 = arith.constant 0 : index
    %32 = memref.load %arg2[%c0_14, %c0_15] : memref<1x1xf32, #tpu.memory_space<smem>>
    %33 = vector.broadcast %32 : f32 to vector<16x128xf32>
    %34 = arith.mulf %33, %31 : vector<16x128xf32>
    %35 = arith.addf %34, %3 : vector<16x128xf32>
    %c0_16 = arith.constant 0 : index
    %c0_17 = arith.constant 0 : index
    %c0_18 = arith.constant 0 : index
    %36 = vector.load %arg7[%c0_16, %c0_17, %c0_18] : memref<1x16x128xf32, #tpu.memory_space<vmem>>, vector<1x16x128xf32>
    %37 = vector.shape_cast %36 : vector<1x16x128xf32> to vector<16x128xf32>
    %38 = vector.shape_cast %35 : vector<16x128xf32> to vector<1x16x128xf32>
    tpu.vector_store %arg7[%c0_16, %c0_17, %c0_18], %38 {strides = array<i32>} : memref<1x16x128xf32, #tpu.memory_space<vmem>>, vector<1x16x128xf32>,
    return
  }
  func.func @transform_0(%arg0: i32, %arg1: i32) -> (i32, i32) {
    %c0_i32 = arith.constant 0 : i32
    %c0_i32_0 = arith.constant 0 : i32
    %c0_i32_1 = arith.constant 0 : i32
    return %c0_i32, %c0_i32_0 : i32, i32
  }
  func.func @transform_1(%arg0: i32, %arg1: i32) -> (i32, i32, i32) {
    %c0_i32 = arith.constant 0 : i32
    %c0_i32_0 = arith.constant 0 : i32
    %c0_i32_1 = arith.constant 0 : i32
    return %arg0, %c0_i32, %c0_i32_0 : i32, i32, i32
  }
  func.func @transform_2(%arg0: i32, %arg1: i32) -> (i32, i32, i32) {
    %c0_i32 = arith.constant 0 : i32
    %c0_i32_0 = arith.constant 0 : i32
    return %arg0, %c0_i32, %arg1 : i32, i32, i32
  }
  func.func @transform_3(%arg0: i32, %arg1: i32) -> (i32, i32) {
    %c0_i32 = arith.constant 0 : i32
    %c0_i32_0 = arith.constant 0 : i32
    %c0_i32_1 = arith.constant 0 : i32
    return %c0_i32, %c0_i32_0 : i32, i32
  }
  func.func @transform_4(%arg0: i32, %arg1: i32) -> (i32, i32) {
    %c0_i32 = arith.constant 0 : i32
    %c0_i32_0 = arith.constant 0 : i32
    %c0_i32_1 = arith.constant 0 : i32
    return %c0_i32, %c0_i32_0 : i32, i32
  }
  func.func @transform_5(%arg0: i32, %arg1: i32) -> (i32, i32, i32) {
    %c0_i32 = arith.constant 0 : i32
    %c0_i32_0 = arith.constant 0 : i32
    return %arg0, %c0_i32, %arg1 : i32, i32, i32
  }
}

</mosaic_0001>

<llo_original>
// kernel: tpu_custom_call.1
$region0: #{tpu_custom_call.1}
  #allocation0 [shape = 'u32[]', space=smem, size = 0x4, offset = 0x4, fixed_abs, tag = 'smem constant byte address 0x4 - core index']
  #allocation1 [shape = 'u32[72,128]{1,0:T(1,128)}', space=vmem, size = 0x9000, scoped, tag = 'internal scratch']
  #allocation2 [shape = 'f32[1,1]{1,0:T(1,128)S(6)}', space=smem, size = 0x200, scoped, tag = 'scoped memory for tpu_custom_call.1']
  %s0 = inlined_call_operand.<no memory space> [shape: f32[1,1], index: 0, kind: input, shape index: {}]
  %s1 = inlined_call_operand.vmem [shape: f32[2,16,256], index: 1, kind: input, shape index: {}]
  %s2 = inlined_call_operand.hbm [shape: f32[2,16,256], index: 2, kind: input, shape index: {}]
  %s3 = inlined_call_operand.vmem [shape: f32[32,16], index: 3, kind: input, shape index: {}]
  %s4 = inlined_call_operand.vmem [shape: f32[32,1], index: 4, kind: input, shape index: {}]
  %s5 = inlined_call_operand.hbm [shape: f32[2,16,256], index: 5, kind: output, shape index: {}]
  %s6 = sld [smem:[#allocation0]]
  $region57: #{tpu_custom_call.1} parent=0
    _
  %s8 = ssub.s32 1, %s6
  %s9 = scalar_select 0, %s8, %s6
  %10 = sst [smem:[#allocation2]] %s0
  $region1: #{tpu_custom_call.1} parent=0
    #allocation3 [shape = 'u8[16384]{0}', space=vmem, size = 0x4000, scoped, tag = 'input window, operand 2']
    #allocation4 [shape = 's32[2]{0}', space=sflag, size = 0x8, scoped, tag = 'scoped memory for tpu_custom_call.1']
    #allocation5 [shape = 's32[2]{0}', space=sflag, size = 0x8, scoped, tag = 'scoped memory for tpu_custom_call.1']
    #allocation6 [shape = 'u8[16384]{0}', space=vmem, size = 0x4000, scoped, tag = 'output window, operand 0']
    %11 = vsyncpa [#allocation4], 0
    %s12 = scalar_lea.sflag [#allocation4], 1
    %13 = vsyncpa %s12, 0
    %14 = vsyncpa [#allocation5], 0
    %s15 = scalar_lea.sflag [#allocation5], 1
    %16 = vsyncpa %s15, 0
    loop: start=0, step=1, limit=6
    $region2: #{tpu_custom_call.1} parent=1 // loop_pre_header
      _
    $region3: #{tpu_custom_call.1} parent=1 // loop_header
      %s18 = sphi 0, %s22
      %p19 = scmp.ge.s32.totalorder %s18, 6
      %s25 = sphi 0, %s37
      %s26 = sphi 0, %s33
      %s27 = sphi 0, %s25
      %s28 = sphi 0, %s26
      %s29 = sphi 0, %s27
      %s30 = sphi 0, %s28
      %s38 = sphi 0, %s38
      %s40 = sphi 0, %s38
      %s41 = sphi 0, %s40
      %s55 = sphi 0, %s41
      %s61 = sphi 0, %s63
      %s64 = sphi 0, %s61
      %s65 = sphi 0, %s64
      %s81 = sphi 0, %s65
      %s89 = sphi 0, %s91
      %s92 = sphi 0, %s89
      %s93 = sphi 0, %s92
      %s109 = sphi 0, %s93
      %s113 = sphi 0, %s113
      %s115 = sphi 0, %s113
      %s116 = sphi 0, %s115
      %s130 = sphi 0, %s116
      %s134 = sphi 0, %s134
      %s136 = sphi 0, %s134
      %s137 = sphi 0, %s136
      %s151 = sphi 0, %s137
      %s159 = sphi 0, %s161
      %s162 = sphi 0, %s159
      %s163 = sphi 0, %s162
      %s179 = sphi 0, %s163
    $region4: #{tpu_custom_call.1} parent=1 // loop_header_branch
      %21 = sbr.rel (%p19) target = $region8
    $region5: #{tpu_custom_call.1} parent=1 // loop_body
      %s23 = ssub.s32 %s18, 1
      %s24 = ssub.s32 %s18, 2
      %s31 = sadd.s32 1, %s26
      %p32 = scmp.ge.s32.totalorder %s31, 2
      %s33 = scalar_select %p32, 0, %s31
      %s34 = sadd.s32 1, %s25
      %s35 = scalar_select %p32, %s34, %s25
      %p36 = scmp.ge.s32.totalorder %s35, 2
      %s37 = scalar_select %p36, 0, %s35
      %s39 = sadd.s32 %s38, 1
      %p42 = scmp.eq.s32.totalorder %s18, 3
      %p43 = scmp.ne.s32.totalorder %s38, %s40
      %p44 = scmp.eq.s32.totalorder %s18, 0
      %p45 = por %p43, %p44
      %p46 = scmp.ne.s32.totalorder %s38, %s40
      %p47 = scmp.eq.s32.totalorder %s23, 3
      %p48 = por %p46, %p47
      %p49 = scmp.ne.s32.totalorder %s40, %s41
      %p50 = scmp.eq.s32.totalorder %s23, 0
      %p51 = por %p49, %p50
      %p52 = scmp.ne.s32.totalorder %s40, %s41
      %p53 = scmp.eq.s32.totalorder %s24, 3
      %p54 = por %p52, %p53
      %p56 = scmp.ne.s32.totalorder %s41, %s55
      %p57 = scmp.eq.s32.totalorder %s24, 0
      %p58 = por %p56, %p57
      %s59 = ssub.s32 %s25, %s37
      %p60 = scmp.eq.s32.totalorder %s59, 0
      %s62 = sadd.s32 %s61, 1
      %s63 = scalar_select %p60, %s61, %s62
      %p66 = pneg %p60
      %p67 = scmp.eq.s32.totalorder %s18, 3
      %p68 = por %p66, %p67
      %p69 = scmp.ne.s32.totalorder %s61, %s64
      %p70 = scmp.eq.s32.totalorder %s18, 0
      %p71 = por %p69, %p70
      %p72 = scmp.ne.s32.totalorder %s61, %s64
      %p73 = scmp.eq.s32.totalorder %s23, 3
      %p74 = por %p72, %p73
      %p75 = scmp.ne.s32.totalorder %s64, %s65
      %p76 = scmp.eq.s32.totalorder %s23, 0
      %p77 = por %p75, %p76
      %p78 = scmp.ne.s32.totalorder %s64, %s65
      %p79 = scmp.eq.s32.totalorder %s24, 3
      %p80 = por %p78, %p79
      %p82 = scmp.ne.s32.totalorder %s65, %s81
      %p83 = scmp.eq.s32.totalorder %s24, 0
      %p84 = por %p82, %p83
      %s85 = ssub.s32 %s25, %s37
      %s86 = ssub.s32 %s26, %s33
      %s87 = sor.u32 %s85, %s86
      %p88 = scmp.eq.s32.totalorder %s87, 0
      %s90 = sadd.s32 %s89, 1
      %s91 = scalar_select %p88, %s89, %s90
      %p94 = pneg %p88
      %p95 = scmp.eq.s32.totalorder %s18, 3
      %p96 = por %p94, %p95
      %p97 = scmp.ne.s32.totalorder %s89, %s92
      %p98 = scmp.eq.s32.totalorder %s18, 0
      %p99 = por %p97, %p98
      %p100 = scmp.ne.s32.totalorder %s89, %s92
      %p101 = scmp.eq.s32.totalorder %s23, 3
      %p102 = por %p100, %p101
      %p103 = scmp.ne.s32.totalorder %s92, %s93
      %p104 = scmp.eq.s32.totalorder %s23, 0
      %p105 = por %p103, %p104
      %p106 = scmp.ne.s32.totalorder %s92, %s93
      %p107 = scmp.eq.s32.totalorder %s24, 3
      %p108 = por %p106, %p107
      %p110 = scmp.ne.s32.totalorder %s93, %s109
      %p111 = scmp.eq.s32.totalorder %s24, 0
      %p112 = por %p110, %p111
      %s114 = sadd.s32 %s113, 1
      %p117 = scmp.eq.s32.totalorder %s18, 3
      %p118 = scmp.ne.s32.totalorder %s113, %s115
      %p119 = scmp.eq.s32.totalorder %s18, 0
      %p120 = por %p118, %p119
      %p121 = scmp.ne.s32.totalorder %s113, %s115
      %p122 = scmp.eq.s32.totalorder %s23, 3
      %p123 = por %p121, %p122
      %p124 = scmp.ne.s32.totalorder %s115, %s116
      %p125 = scmp.eq.s32.totalorder %s23, 0
      %p126 = por %p124, %p125
      %p127 = scmp.ne.s32.totalorder %s115, %s116
      %p128 = scmp.eq.s32.totalorder %s24, 3
      %p129 = por %p127, %p128
      %p131 = scmp.ne.s32.totalorder %s116, %s130
      %p132 = scmp.eq.s32.totalorder %s24, 0
      %p133 = por %p131, %p132
      %s135 = sadd.s32 %s134, 1
      %p138 = scmp.eq.s32.totalorder %s18, 3
      %p139 = scmp.ne.s32.totalorder %s134, %s136
      %p140 = scmp.eq.s32.totalorder %s18, 0
      %p141 = por %p139, %p140
      %p142 = scmp.ne.s32.totalorder %s134, %s136
      %p143 = scmp.eq.s32.totalorder %s23, 3
      %p144 = por %p142, %p143
      %p145 = scmp.ne.s32.totalorder %s136, %s137
      %p146 = scmp.eq.s32.totalorder %s23, 0
      %p147 = por %p145, %p146
      %p148 = scmp.ne.s32.totalorder %s136, %s137
      %p149 = scmp.eq.s32.totalorder %s24, 3
      %p150 = por %p148, %p149
      %p152 = scmp.ne.s32.totalorder %s137, %s151
      %p153 = scmp.eq.s32.totalorder %s24, 0
      %p154 = por %p152, %p153
      %s155 = ssub.s32 %s25, %s37
      %s156 = ssub.s32 %s26, %s33
      %s157 = sor.u32 %s155, %s156
      %p158 = scmp.eq.s32.totalorder %s157, 0
      %s160 = sadd.s32 %s159, 1
      %s161 = scalar_select %p158, %s159, %s160
      %p164 = pneg %p158
      %p165 = scmp.eq.s32.totalorder %s18, 3
      %p166 = por %p164, %p165
      %p167 = scmp.ne.s32.totalorder %s159, %s162
      %p168 = scmp.eq.s32.totalorder %s18, 0
      %p169 = por %p167, %p168
      %p170 = scmp.ne.s32.totalorder %s159, %s162
      %p171 = scmp.eq.s32.totalorder %s23, 3
      %p172 = por %p170, %p171
      %p173 = scmp.ne.s32.totalorder %s162, %s163
      %p174 = scmp.eq.s32.totalorder %s23, 0
      %p175 = por %p173, %p174
      %p176 = scmp.ne.s32.totalorder %s162, %s163
      %p177 = scmp.eq.s32.totalorder %s24, 3
      %p178 = por %p176, %p177
      %p180 = scmp.ne.s32.totalorder %s163, %s179
      %p181 = scmp.eq.s32.totalorder %s24, 0
      %p182 = por %p180, %p181
      %p183 = scmp.le.s32.totalorder 1, %s18
      %p184 = scmp.lt.s32.totalorder %s18, 5
      %p185 = pnand %p183, %p184
      %p186 = pneg %p185
      // Predicated region
      $region9: #{tpu_custom_call.1} parent=5 // pred_check
        _
      $region10: #{tpu_custom_call.1} parent=5 // pred_check_branch
        %188 = sbr.rel (%p185) target = $region12
      $region11: #{tpu_custom_call.1} parent=5 // pred_region
        %s189 = ssub.s32 %s18, 1
        // Predicated region
        $region13: #{tpu_custom_call.1} parent=11 // pred_check
          %p190 = pneg %p51
        $region14: #{tpu_custom_call.1} parent=11 // pred_check_branch
          %192 = sbr.rel (%p190) target = $region16
        $region15: #{tpu_custom_call.1} parent=11 // pred_region
          _
        $region16: #{tpu_custom_call.1} parent=11 // pred_fallthru
          _
        // Predicated region
        $region17: #{tpu_custom_call.1} parent=11 // pred_check
          %p193 = pneg %p126
        $region18: #{tpu_custom_call.1} parent=11 // pred_check_branch
          %195 = sbr.rel (%p193) target = $region20
        $region19: #{tpu_custom_call.1} parent=11 // pred_region
          _
        $region20: #{tpu_custom_call.1} parent=11 // pred_fallthru
          _
        // Predicated region
        $region21: #{tpu_custom_call.1} parent=11 // pred_check
          %p196 = pneg %p147
        $region22: #{tpu_custom_call.1} parent=11 // pred_check_branch
          %198 = sbr.rel (%p196) target = $region24
        $region23: #{tpu_custom_call.1} parent=11 // pred_region
          _
        $region24: #{tpu_custom_call.1} parent=11 // pred_fallthru
          _
      $region12: #{tpu_custom_call.1} parent=5 // pred_fallthru
        _
      %p199 = scmp.lt.s32.totalorder %s18, 4
      // Predicated region
      $region25: #{tpu_custom_call.1} parent=5 // pred_check
        %p200 = pneg %p199
      $region26: #{tpu_custom_call.1} parent=5 // pred_check_branch
        %202 = sbr.rel (%p200) target = $region28
      $region27: #{tpu_custom_call.1} parent=5 // pred_region
        // Predicated region
        $region29: #{tpu_custom_call.1} parent=27 // pred_check
          %p203 = pneg %p71
        $region30: #{tpu_custom_call.1} parent=27 // pred_check_branch
          %205 = sbr.rel (%p203) target = $region32
        $region31: #{tpu_custom_call.1} parent=27 // pred_region
          %p206 = scmp.lt.s32.totalorder %s25, 1
          %s207 = scalar_select %p206, %s25, 1
          %s208 = smul.addr %s207, 4
          %s209 = smul.addr %s208, 8
          %s210 = scalar_lea.vmem %s1, %s209
        $region32: #{tpu_custom_call.1} parent=27 // pred_fallthru
          _
        // Predicated region
        $region33: #{tpu_custom_call.1} parent=27 // pred_check
          %p211 = pneg %p99
        $region34: #{tpu_custom_call.1} parent=27 // pred_check_branch
          %213 = sbr.rel (%p211) target = $region36
        $region35: #{tpu_custom_call.1} parent=27 // pred_region
          %s214 = sand.u32 %s89, 1
          %s215 = scalar_lea.sflag [#allocation4], %s214
          %s216 = sand.u32 %s89, 1
          %s217 = smul.addr %s216, 16
          %s218 = scalar_lea.vmem [#allocation3], %s217
          %220 = vsyncadd %s215, 0
          %s221 = smul.addr %s25, 4
          %s222 = sadd.s32 %s26, %s221
          %s223 = smul.addr %s222, 8
          %s224 = scalar_lea.hbm %s2, %s223
          %s225 = sshll.u32 %s224, 4
          %s226 = int_to_ptr.hbm [resolvable:$true] %s225
          %s227 = sshll.u32 %s218, 4
          %s228 = int_to_ptr.vmem [resolvable:$true] %s227
          %233 = dma.hbm_to_vmem [thread:$0]  %s226, 256, %s228, %s215, 256, 128, 8
        $region36: #{tpu_custom_call.1} parent=27 // pred_fallthru
          _
      $region28: #{tpu_custom_call.1} parent=5 // pred_fallthru
        _
      %p234 = scmp.le.s32.totalorder 1, %s18
      %p235 = scmp.lt.s32.totalorder %s18, 5
      %p236 = pnand %p234, %p235
      %p237 = pneg %p236
      // Predicated region
      $region37: #{tpu_custom_call.1} parent=5 // pred_check
        _
      $region38: #{tpu_custom_call.1} parent=5 // pred_check_branch
        %239 = sbr.rel (%p236) target = $region40
      $region39: #{tpu_custom_call.1} parent=5 // pred_region
        %s240 = ssub.s32 %s18, 1
        %s241 = sand.u32 %s92, 1
        %s242 = scalar_lea.sflag [#allocation4], %s241
        %s243 = sand.u32 %s92, 1
        %s244 = smul.addr %s243, 16
        %s245 = scalar_lea.vmem [#allocation3], %s244
        // Predicated region
        $region41: #{tpu_custom_call.1} parent=39 // pred_check
          %p246 = pneg %p105
        $region42: #{tpu_custom_call.1} parent=39 // pred_check_branch
          %248 = sbr.rel (%p246) target = $region44
        $region43: #{tpu_custom_call.1} parent=39 // pred_region
          %250 = dma.done %s242, 256
        $region44: #{tpu_custom_call.1} parent=39 // pred_fallthru
          _
        %p251 = pneg %p51
        %p252 = pneg %p48
        %p253 = scmp.lt.s32.totalorder %s27, 1
        %s254 = scalar_select %p253, %s27, 1
        %s255 = smul.addr %s254, 4
        %s256 = smul.addr %s255, 8
        %s257 = scalar_lea.vmem %s1, %s256
        %p258 = pneg %p77
        %p259 = pneg %p74
        %s260 = sand.u32 %s92, 1
        %s261 = scalar_lea.sflag [#allocation4], %s260
        %s262 = sand.u32 %s92, 1
        %s263 = smul.addr %s262, 16
        %s264 = scalar_lea.vmem [#allocation3], %s263
        %p265 = pneg %p105
        %p266 = pneg %p102
        %p267 = pneg %p126
        %p268 = pneg %p123
        %p269 = pneg %p147
        %p270 = pneg %p144
        %p271 = pneg %p175
        %p272 = pneg %p172
        %s273 = sand.u32 %s162, 1
        %s274 = scalar_lea.sflag [#allocation5], %s273
        %s275 = sand.u32 %s162, 1
        %s276 = smul.addr %s275, 16
        %s277 = scalar_lea.vmem [#allocation6], %s276
        %p278 = scmp.lt.s32.totalorder %s27, 1
        %s279 = scalar_select %p278, %s27, 1
        %s280 = smul.addr %s279, 4
        %s281 = smul.addr %s280, 8
        %s282 = scalar_lea.vmem %s1, %s281
        %v283 = vld [vmem:[%s282] sm:$0xff]
        %v284 = vld [vmem:[%s282 + $0x8] sm:$0xff]
        %v285 = vld [vmem:[%s282 + $0x10] sm:$0xff]
        %v286 = vld [vmem:[%s282 + $0x18] sm:$0xff]
        %v287 = vld [vmem:[%s245] sm:$0xff]
        %v288 = vld [vmem:[%s245 + $0x8] sm:$0xff]
        %v289 = vld [vmem:[%s3] sm:$0xff]
        %v290 = vld [vmem:[%s3 + $0x8] sm:$0xff]
        %v291 = vld [vmem:[%s3 + $0x10] sm:$0xff]
        %v292 = vld [vmem:[%s3 + $0x18] sm:$0xff]
        %v293 = vld [vmem:[%s4] sm:$0xff]
        %v294 = vld [vmem:[%s4 + $0x8] sm:$0xff]
        %v295 = vld [vmem:[%s4 + $0x10] sm:$0xff]
        %v296 = vld [vmem:[%s4 + $0x18] sm:$0xff]
        %298 = vset.pattern.permute.xlu0 0
        %299 = vperm.xlu0 %298, %v294
        %v300 = vpop.permute.xlu0 %299
        %303 = vset.pattern.permute.xlu0 0
        %304 = vperm.xlu0 %303, %v295
        %v305 = vpop.permute.xlu0 %304
        %308 = vset.pattern.permute.xlu0 0
        %309 = vperm.xlu0 %308, %v296
        %v310 = vpop.permute.xlu0 %309
        %vm312 = vcmask 130048
        %v314 = vsel %vm312, %v290, 0
        %v317 = vsel %vm312, %v291, 0
        %v320 = vsel %vm312, %v292, 0
        %322 = vmatpush.msra.mxu0 0.0
        %323 = vmatpush.msra.mxu0 0.0
        %324 = vmatpush.msra.mxu0 0.0
        %325 = vmatpush.msra.mxu0 0.0
        %326 = vmatpush.msra.mxu0 0.0
        %327 = vmatpush.msra.mxu0 0.0
        %328 = vmatpush.msra.mxu0 0.0
        %329 = vmatpush.msra.mxu0 0.0
        %330 = vmatpush.msra.mxu0 0.0
        %331 = vmatpush.msra.mxu0 0.0
        %332 = vmatpush.msra.mxu0 0.0
        %333 = vmatpush.msra.mxu0 0.0
        %334 = vmatpush.msra.mxu0 0.0
        %335 = vmatpush.msra.mxu0 0.0
        %336 = vmatpush.msra.mxu0 %v285
        %337 = vmatpush.msra.mxu0 %v283
        %338 = vmatmul.f32.gmra.mxu0 %v314
        %v339 = vpop.f32.mrf.mxu0
        %v340 = vadd.f32 %v300, %v339
        %341 = vmatmul.f32.gmra.mxu0 %v317
        %v342 = vpop.f32.mrf.mxu0
        %v343 = vadd.f32 %v305, %v342
        %344 = vmatmul.f32.gmra.mxu0 %v320
        %v345 = vpop.f32.mrf.mxu0
        %v346 = vadd.f32 %v310, %v345
        %347 = vdwg.mxu0
        %348 = vmatpush.msra.mxu0 0.0
        %349 = vmatpush.msra.mxu0 0.0
        %350 = vmatpush.msra.mxu0 0.0
        %351 = vmatpush.msra.mxu0 0.0
        %352 = vmatpush.msra.mxu0 0.0
        %353 = vmatpush.msra.mxu0 0.0
        %354 = vmatpush.msra.mxu0 0.0
        %355 = vmatpush.msra.mxu0 0.0
        %356 = vmatpush.msra.mxu0 0.0
        %357 = vmatpush.msra.mxu0 0.0
        %358 = vmatpush.msra.mxu0 0.0
        %359 = vmatpush.msra.mxu0 0.0
        %360 = vmatpush.msra.mxu0 0.0
        %361 = vmatpush.msra.mxu0 0.0
        %362 = vmatpush.msra.mxu0 %v286
        %363 = vmatpush.msra.mxu0 %v284
        %364 = vmatmul.f32.gmra.mxu0 %v314
        %v365 = vpop.f32.mrf.mxu0
        %v366 = vadd.f32 %v300, %v365
        %367 = vmatmul.f32.gmra.mxu0 %v317
        %v368 = vpop.f32.mrf.mxu0
        %v369 = vadd.f32 %v305, %v368
        %370 = vmatmul.f32.gmra.mxu0 %v320
        %v371 = vpop.f32.mrf.mxu0
        %v372 = vadd.f32 %v310, %v371
        %373 = vdwg.mxu0
        %375 = vset.pattern.permute.xlu0 0
        %376 = vperm.xlu0 %375, %v293
        %v377 = vpop.permute.xlu0 %376
        %v380 = vsel %vm312, %v289, 0
        %382 = vmatpush.msra.mxu0 0.0
        %383 = vmatpush.msra.mxu0 0.0
        %384 = vmatpush.msra.mxu0 0.0
        %385 = vmatpush.msra.mxu0 0.0
        %386 = vmatpush.msra.mxu0 0.0
        %387 = vmatpush.msra.mxu0 0.0
        %388 = vmatpush.msra.mxu0 0.0
        %389 = vmatpush.msra.mxu0 0.0
        %390 = vmatpush.msra.mxu0 0.0
        %391 = vmatpush.msra.mxu0 0.0
        %392 = vmatpush.msra.mxu0 0.0
        %393 = vmatpush.msra.mxu0 0.0
        %394 = vmatpush.msra.mxu0 0.0
        %395 = vmatpush.msra.mxu0 0.0
        %396 = vmatpush.msra.mxu0 %v288
        %397 = vmatpush.msra.mxu0 %v287
        %398 = vmatmul.f32.gmra.mxu0 %v380
        %v399 = vpop.f32.mrf.mxu0
        %v400 = vadd.f32 %v377, %v399
        %401 = vdwg.mxu0
        %402 = vxpose.xlu0.b32.start [1/16] %v400, 128
        %403 = vxpose.xlu0.b32.cont [2/16] 0.0, 128
        %404 = vxpose.xlu0.b32.cont [3/16] 0.0, 128
        %405 = vxpose.xlu0.b32.cont [4/16] 0.0, 128
        %406 = vxpose.xlu0.b32.cont [5/16] 0.0, 128
        %407 = vxpose.xlu0.b32.cont [6/16] 0.0, 128
        %408 = vxpose.xlu0.b32.cont [7/16] 0.0, 128
        %409 = vxpose.xlu0.b32.cont [8/16] 0.0, 128
        %410 = vxpose.xlu0.b32.cont [9/16] 0.0, 128
        %411 = vxpose.xlu0.b32.cont [10/16] 0.0, 128
        %412 = vxpose.xlu0.b32.cont [11/16] 0.0, 128
        %413 = vxpose.xlu0.b32.cont [12/16] 0.0, 128
        %414 = vxpose.xlu0.b32.cont [13/16] 0.0, 128
        %415 = vxpose.xlu0.b32.cont [14/16] 0.0, 128
        %416 = vxpose.xlu0.b32.cont [15/16] 0.0, 128
        %417 = vxpose.xlu0.b32.end [16/16] 0.0, 128
        %v418 = vpop.trf.xlu0
        %v419 = vpop.trf.xlu0
        %v420 = vpop.trf.xlu0
        %v421 = vpop.trf.xlu0
        %v422 = vpop.trf.xlu0
        %v423 = vpop.trf.xlu0
        %v424 = vpop.trf.xlu0
        %v425 = vpop.trf.xlu0
        %v426 = vpop.trf.xlu0
        %v427 = vpop.trf.xlu0
        %v428 = vpop.trf.xlu0
        %v429 = vpop.trf.xlu0
        %v430 = vpop.trf.xlu0
        %v431 = vpop.trf.xlu0
        %v432 = vpop.trf.xlu0
        %v433 = vpop.trf.xlu0
        %vm434 = vcmask 64512
        %v436 = vsel %vm434, %v418, 0
        %v439 = vsel %vm434, %v419, 0
        %v442 = vsel %vm434, %v420, 0
        %v445 = vsel %vm434, %v421, 0
        %v448 = vsel %vm434, %v422, 0
        %v451 = vsel %vm434, %v423, 0
        %v454 = vsel %vm434, %v424, 0
        %v457 = vsel %vm434, %v425, 0
        %v460 = vsel %vm434, %v426, 0
        %v463 = vsel %vm434, %v427, 0
        %v466 = vsel %vm434, %v428, 0
        %v469 = vsel %vm434, %v429, 0
        %v472 = vsel %vm434, %v430, 0
        %v475 = vsel %vm434, %v431, 0
        %v478 = vsel %vm434, %v432, 0
        %v481 = vsel %vm434, %v433, 0
        %483 = vmatpush.msra.mxu0 0.0
        %484 = vmatpush.msra.mxu0 0.0
        %485 = vmatpush.msra.mxu0 0.0
        %486 = vmatpush.msra.mxu0 0.0
        %487 = vmatpush.msra.mxu0 0.0
        %488 = vmatpush.msra.mxu0 0.0
        %489 = vmatpush.msra.mxu0 0.0
        %490 = vmatpush.msra.mxu0 0.0
        %491 = vmatpush.msra.mxu0 0.0
        %492 = vmatpush.msra.mxu0 0.0
        %493 = vmatpush.msra.mxu0 0.0
        %494 = vmatpush.msra.mxu0 0.0
        %495 = vmatpush.msra.mxu0 0.0
        %496 = vmatpush.msra.mxu0 0.0
        %497 = vmatpush.msra.mxu0 0.0
        %498 = vmatpush.msra.mxu0 %v340
        %499 = vmatmul.f32.gmra.mxu0 %v436
        %v500 = vpop.f32.mrf.mxu0
        %v501 = vadd.f32 0.0, %v500
        %502 = vmatmul.f32.gmra.mxu0 %v439
        %v503 = vpop.f32.mrf.mxu0
        %v504 = vadd.f32 0.0, %v503
        %505 = vmatmul.f32.gmra.mxu0 %v442
        %v506 = vpop.f32.mrf.mxu0
        %v507 = vadd.f32 0.0, %v506
        %508 = vmatmul.f32.gmra.mxu0 %v445
        %v509 = vpop.f32.mrf.mxu0
        %v510 = vadd.f32 0.0, %v509
        %511 = vmatmul.f32.gmra.mxu0 %v448
        %v512 = vpop.f32.mrf.mxu0
        %v513 = vadd.f32 0.0, %v512
        %514 = vmatmul.f32.gmra.mxu0 %v451
        %v515 = vpop.f32.mrf.mxu0
        %v516 = vadd.f32 0.0, %v515
        %517 = vmatmul.f32.gmra.mxu0 %v454
        %v518 = vpop.f32.mrf.mxu0
        %v519 = vadd.f32 0.0, %v518
        %520 = vmatmul.f32.gmra.mxu0 %v457
        %v521 = vpop.f32.mrf.mxu0
        %v522 = vadd.f32 0.0, %v521
        %523 = vmatmul.f32.gmra.mxu0 %v460
        %v524 = vpop.f32.mrf.mxu0
        %v525 = vadd.f32 0.0, %v524
        %526 = vmatmul.f32.gmra.mxu0 %v463
        %v527 = vpop.f32.mrf.mxu0
        %v528 = vadd.f32 0.0, %v527
        %529 = vmatmul.f32.gmra.mxu0 %v466
        %v530 = vpop.f32.mrf.mxu0
        %v531 = vadd.f32 0.0, %v530
        %532 = vmatmul.f32.gmra.mxu0 %v469
        %v533 = vpop.f32.mrf.mxu0
        %v534 = vadd.f32 0.0, %v533
        %535 = vmatmul.f32.gmra.mxu0 %v472
        %v536 = vpop.f32.mrf.mxu0
        %v537 = vadd.f32 0.0, %v536
        %538 = vmatmul.f32.gmra.mxu0 %v475
        %v539 = vpop.f32.mrf.mxu0
        %v540 = vadd.f32 0.0, %v539
        %541 = vmatmul.f32.gmra.mxu0 %v478
        %v542 = vpop.f32.mrf.mxu0
        %v543 = vadd.f32 0.0, %v542
        %544 = vmatmul.f32.gmra.mxu0 %v481
        %v545 = vpop.f32.mrf.mxu0
        %v546 = vadd.f32 0.0, %v545
        %547 = vdwg.mxu0
        %548 = vmatpush.msra.mxu0 0.0
        %549 = vmatpush.msra.mxu0 0.0
        %550 = vmatpush.msra.mxu0 0.0
        %551 = vmatpush.msra.mxu0 0.0
        %552 = vmatpush.msra.mxu0 0.0
        %553 = vmatpush.msra.mxu0 0.0
        %554 = vmatpush.msra.mxu0 0.0
        %555 = vmatpush.msra.mxu0 0.0
        %556 = vmatpush.msra.mxu0 0.0
        %557 = vmatpush.msra.mxu0 0.0
        %558 = vmatpush.msra.mxu0 0.0
        %559 = vmatpush.msra.mxu0 0.0
        %560 = vmatpush.msra.mxu0 0.0
        %561 = vmatpush.msra.mxu0 0.0
        %562 = vmatpush.msra.mxu0 0.0
        %563 = vmatpush.msra.mxu0 %v366
        %564 = vmatmul.f32.gmra.mxu0 %v436
        %v565 = vpop.f32.mrf.mxu0
        %v566 = vadd.f32 0.0, %v565
        %567 = vmatmul.f32.gmra.mxu0 %v439
        %v568 = vpop.f32.mrf.mxu0
        %v569 = vadd.f32 0.0, %v568
        %570 = vmatmul.f32.gmra.mxu0 %v442
        %v571 = vpop.f32.mrf.mxu0
        %v572 = vadd.f32 0.0, %v571
        %573 = vmatmul.f32.gmra.mxu0 %v445
        %v574 = vpop.f32.mrf.mxu0
        %v575 = vadd.f32 0.0, %v574
        %576 = vmatmul.f32.gmra.mxu0 %v448
        %v577 = vpop.f32.mrf.mxu0
        %v578 = vadd.f32 0.0, %v577
        %579 = vmatmul.f32.gmra.mxu0 %v451
        %v580 = vpop.f32.mrf.mxu0
        %v581 = vadd.f32 0.0, %v580
        %582 = vmatmul.f32.gmra.mxu0 %v454
        %v583 = vpop.f32.mrf.mxu0
        %v584 = vadd.f32 0.0, %v583
        %585 = vmatmul.f32.gmra.mxu0 %v457
        %v586 = vpop.f32.mrf.mxu0
        %v587 = vadd.f32 0.0, %v586
        %588 = vmatmul.f32.gmra.mxu0 %v460
        %v589 = vpop.f32.mrf.mxu0
        %v590 = vadd.f32 0.0, %v589
        %591 = vmatmul.f32.gmra.mxu0 %v463
        %v592 = vpop.f32.mrf.mxu0
        %v593 = vadd.f32 0.0, %v592
        %594 = vmatmul.f32.gmra.mxu0 %v466
        %v595 = vpop.f32.mrf.mxu0
        %v596 = vadd.f32 0.0, %v595
        %597 = vmatmul.f32.gmra.mxu0 %v469
        %v598 = vpop.f32.mrf.mxu0
        %v599 = vadd.f32 0.0, %v598
        %600 = vmatmul.f32.gmra.mxu0 %v472
        %v601 = vpop.f32.mrf.mxu0
        %v602 = vadd.f32 0.0, %v601
        %603 = vmatmul.f32.gmra.mxu0 %v475
        %v604 = vpop.f32.mrf.mxu0
        %v605 = vadd.f32 0.0, %v604
        %606 = vmatmul.f32.gmra.mxu0 %v478
        %v607 = vpop.f32.mrf.mxu0
        %v608 = vadd.f32 0.0, %v607
        %609 = vmatmul.f32.gmra.mxu0 %v481
        %v610 = vpop.f32.mrf.mxu0
        %v611 = vadd.f32 0.0, %v610
        %612 = vdwg.mxu0
        %v613 = vmax.f32 %v501, %v566
        %614 = vmax.xlane.f32.xlu0 %v613
        %v615 = vpop.xlane.xlu0 %614
        %v616 = vmax.f32 %v504, %v569
        %617 = vmax.xlane.f32.xlu0 %v616
        %v618 = vpop.xlane.xlu0 %617
        %v619 = vmax.f32 %v507, %v572
        %620 = vmax.xlane.f32.xlu0 %v619
        %v621 = vpop.xlane.xlu0 %620
        %v622 = vmax.f32 %v510, %v575
        %623 = vmax.xlane.f32.xlu0 %v622
        %v624 = vpop.xlane.xlu0 %623
        %v625 = vmax.f32 %v513, %v578
        %626 = vmax.xlane.f32.xlu0 %v625
        %v627 = vpop.xlane.xlu0 %626
        %v628 = vmax.f32 %v516, %v581
        %629 = vmax.xlane.f32.xlu0 %v628
        %v630 = vpop.xlane.xlu0 %629
        %v631 = vmax.f32 %v519, %v584
        %632 = vmax.xlane.f32.xlu0 %v631
        %v633 = vpop.xlane.xlu0 %632
        %v634 = vmax.f32 %v522, %v587
        %635 = vmax.xlane.f32.xlu0 %v634
        %v636 = vpop.xlane.xlu0 %635
        %v637 = vmax.f32 %v525, %v590
        %638 = vmax.xlane.f32.xlu0 %v637
        %v639 = vpop.xlane.xlu0 %638
        %v640 = vmax.f32 %v528, %v593
        %641 = vmax.xlane.f32.xlu0 %v640
        %v642 = vpop.xlane.xlu0 %641
        %v643 = vmax.f32 %v531, %v596
        %644 = vmax.xlane.f32.xlu0 %v643
        %v645 = vpop.xlane.xlu0 %644
        %v646 = vmax.f32 %v534, %v599
        %647 = vmax.xlane.f32.xlu0 %v646
        %v648 = vpop.xlane.xlu0 %647
        %v649 = vmax.f32 %v537, %v602
        %650 = vmax.xlane.f32.xlu0 %v649
        %v651 = vpop.xlane.xlu0 %650
        %v652 = vmax.f32 %v540, %v605
        %653 = vmax.xlane.f32.xlu0 %v652
        %v654 = vpop.xlane.xlu0 %653
        %v655 = vmax.f32 %v543, %v608
        %656 = vmax.xlane.f32.xlu0 %v655
        %v657 = vpop.xlane.xlu0 %656
        %v658 = vmax.f32 %v546, %v611
        %659 = vmax.xlane.f32.xlu0 %v658
        %v660 = vpop.xlane.xlu0 %659
        %v661 = vsub.f32 %v501, %v615
        %v662 = vsub.f32 %v566, %v615
        %v663 = vsub.f32 %v504, %v618
        %v664 = vsub.f32 %v569, %v618
        %v665 = vsub.f32 %v507, %v621
        %v666 = vsub.f32 %v572, %v621
        %v667 = vsub.f32 %v510, %v624
        %v668 = vsub.f32 %v575, %v624
        %v669 = vsub.f32 %v513, %v627
        %v670 = vsub.f32 %v578, %v627
        %v671 = vsub.f32 %v516, %v630
        %v672 = vsub.f32 %v581, %v630
        %v673 = vsub.f32 %v519, %v633
        %v674 = vsub.f32 %v584, %v633
        %v675 = vsub.f32 %v522, %v636
        %v676 = vsub.f32 %v587, %v636
        %v677 = vsub.f32 %v525, %v639
        %v678 = vsub.f32 %v590, %v639
        %v679 = vsub.f32 %v528, %v642
        %v680 = vsub.f32 %v593, %v642
        %v681 = vsub.f32 %v531, %v645
        %v682 = vsub.f32 %v596, %v645
        %v683 = vsub.f32 %v534, %v648
        %v684 = vsub.f32 %v599, %v648
        %v685 = vsub.f32 %v537, %v651
        %v686 = vsub.f32 %v602, %v651
        %v687 = vsub.f32 %v540, %v654
        %v688 = vsub.f32 %v605, %v654
        %v689 = vsub.f32 %v543, %v657
        %v690 = vsub.f32 %v608, %v657
        %v691 = vsub.f32 %v546, %v660
        %v692 = vsub.f32 %v611, %v660
        %v693 = vmul.f32 %v661, 1.442695
        %v694 = vpow.pop %v693
        %v695 = vmul.f32 %v662, 1.442695
        %v696 = vpow.pop %v695
        %v697 = vmul.f32 %v663, 1.442695
        %v698 = vpow.pop %v697
        %v699 = vmul.f32 %v664, 1.442695
        %v700 = vpow.pop %v699
        %v701 = vmul.f32 %v665, 1.442695
        %v702 = vpow.pop %v701
        %v703 = vmul.f32 %v666, 1.442695
        %v704 = vpow.pop %v703
        %v705 = vmul.f32 %v667, 1.442695
        %v706 = vpow.pop %v705
        %v707 = vmul.f32 %v668, 1.442695
        %v708 = vpow.pop %v707
        %v709 = vmul.f32 %v669, 1.442695
        %v710 = vpow.pop %v709
        %v711 = vmul.f32 %v670, 1.442695
        %v712 = vpow.pop %v711
        %v713 = vmul.f32 %v671, 1.442695
        %v714 = vpow.pop %v713
        %v715 = vmul.f32 %v672, 1.442695
        %v716 = vpow.pop %v715
        %v717 = vmul.f32 %v673, 1.442695
        %v718 = vpow.pop %v717
        %v719 = vmul.f32 %v674, 1.442695
        %v720 = vpow.pop %v719
        %v721 = vmul.f32 %v675, 1.442695
        %v722 = vpow.pop %v721
        %v723 = vmul.f32 %v676, 1.442695
        %v724 = vpow.pop %v723
        %v725 = vmul.f32 %v677, 1.442695
        %v726 = vpow.pop %v725
        %v727 = vmul.f32 %v678, 1.442695
        %v728 = vpow.pop %v727
        %v729 = vmul.f32 %v679, 1.442695
        %v730 = vpow.pop %v729
        %v731 = vmul.f32 %v680, 1.442695
        %v732 = vpow.pop %v731
        %v733 = vmul.f32 %v681, 1.442695
        %v734 = vpow.pop %v733
        %v735 = vmul.f32 %v682, 1.442695
        %v736 = vpow.pop %v735
        %v737 = vmul.f32 %v683, 1.442695
        %v738 = vpow.pop %v737
        %v739 = vmul.f32 %v684, 1.442695
        %v740 = vpow.pop %v739
        %v741 = vmul.f32 %v685, 1.442695
        %v742 = vpow.pop %v741
        %v743 = vmul.f32 %v686, 1.442695
        %v744 = vpow.pop %v743
        %v745 = vmul.f32 %v687, 1.442695
        %v746 = vpow.pop %v745
        %v747 = vmul.f32 %v688, 1.442695
        %v748 = vpow.pop %v747
        %v749 = vmul.f32 %v689, 1.442695
        %v750 = vpow.pop %v749
        %v751 = vmul.f32 %v690, 1.442695
        %v752 = vpow.pop %v751
        %v753 = vmul.f32 %v691, 1.442695
        %v754 = vpow.pop %v753
        %v755 = vmul.f32 %v692, 1.442695
        %v756 = vpow.pop %v755
        %v757 = vadd.f32 %v694, %v696
        %758 = vadd.xlane.f32.xlu0 %v757
        %v759 = vpop.xlane.xlu0 %758
        %v760 = vadd.f32 %v698, %v700
        %761 = vadd.xlane.f32.xlu0 %v760
        %v762 = vpop.xlane.xlu0 %761
        %v763 = vadd.f32 %v702, %v704
        %764 = vadd.xlane.f32.xlu0 %v763
        %v765 = vpop.xlane.xlu0 %764
        %v766 = vadd.f32 %v706, %v708
        %767 = vadd.xlane.f32.xlu0 %v766
        %v768 = vpop.xlane.xlu0 %767
        %v769 = vadd.f32 %v710, %v712
        %770 = vadd.xlane.f32.xlu0 %v769
        %v771 = vpop.xlane.xlu0 %770
        %v772 = vadd.f32 %v714, %v716
        %773 = vadd.xlane.f32.xlu0 %v772
        %v774 = vpop.xlane.xlu0 %773
        %v775 = vadd.f32 %v718, %v720
        %776 = vadd.xlane.f32.xlu0 %v775
        %v777 = vpop.xlane.xlu0 %776
        %v778 = vadd.f32 %v722, %v724
        %779 = vadd.xlane.f32.xlu0 %v778
        %v780 = vpop.xlane.xlu0 %779
        %v781 = vadd.f32 %v726, %v728
        %782 = vadd.xlane.f32.xlu0 %v781
        %v783 = vpop.xlane.xlu0 %782
        %v784 = vadd.f32 %v730, %v732
        %785 = vadd.xlane.f32.xlu0 %v784
        %v786 = vpop.xlane.xlu0 %785
        %v787 = vadd.f32 %v734, %v736
        %788 = vadd.xlane.f32.xlu0 %v787
        %v789 = vpop.xlane.xlu0 %788
        %v790 = vadd.f32 %v738, %v740
        %791 = vadd.xlane.f32.xlu0 %v790
        %v792 = vpop.xlane.xlu0 %791
        %v793 = vadd.f32 %v742, %v744
        %794 = vadd.xlane.f32.xlu0 %v793
        %v795 = vpop.xlane.xlu0 %794
        %v796 = vadd.f32 %v746, %v748
        %797 = vadd.xlane.f32.xlu0 %v796
        %v798 = vpop.xlane.xlu0 %797
        %v799 = vadd.f32 %v750, %v752
        %800 = vadd.xlane.f32.xlu0 %v799
        %v801 = vpop.xlane.xlu0 %800
        %v802 = vadd.f32 %v754, %v756
        %803 = vadd.xlane.f32.xlu0 %v802
        %v804 = vpop.xlane.xlu0 %803
        %v805 = vrcp.pop %v759
        %v806 = vrcp.pop %v762
        %v807 = vrcp.pop %v765
        %v808 = vrcp.pop %v768
        %v809 = vrcp.pop %v771
        %v810 = vrcp.pop %v774
        %v811 = vrcp.pop %v777
        %v812 = vrcp.pop %v780
        %v813 = vrcp.pop %v783
        %v814 = vrcp.pop %v786
        %v815 = vrcp.pop %v789
        %v816 = vrcp.pop %v792
        %v817 = vrcp.pop %v795
        %v818 = vrcp.pop %v798
        %v819 = vrcp.pop %v801
        %v820 = vrcp.pop %v804
        %v821 = vmul.f32 %v694, %v805
        %v822 = vmul.f32 %v696, %v805
        %v823 = vmul.f32 %v698, %v806
        %v824 = vmul.f32 %v700, %v806
        %v825 = vmul.f32 %v702, %v807
        %v826 = vmul.f32 %v704, %v807
        %v827 = vmul.f32 %v706, %v808
        %v828 = vmul.f32 %v708, %v808
        %v829 = vmul.f32 %v710, %v809
        %v830 = vmul.f32 %v712, %v809
        %v831 = vmul.f32 %v714, %v810
        %v832 = vmul.f32 %v716, %v810
        %v833 = vmul.f32 %v718, %v811
        %v834 = vmul.f32 %v720, %v811
        %v835 = vmul.f32 %v722, %v812
        %v836 = vmul.f32 %v724, %v812
        %v837 = vmul.f32 %v726, %v813
        %v838 = vmul.f32 %v728, %v813
        %v839 = vmul.f32 %v730, %v814
        %v840 = vmul.f32 %v732, %v814
        %v841 = vmul.f32 %v734, %v815
        %v842 = vmul.f32 %v736, %v815
        %v843 = vmul.f32 %v738, %v816
        %v844 = vmul.f32 %v740, %v816
        %v845 = vmul.f32 %v742, %v817
        %v846 = vmul.f32 %v744, %v817
        %v847 = vmul.f32 %v746, %v818
        %v848 = vmul.f32 %v748, %v818
        %v849 = vmul.f32 %v750, %v819
        %v850 = vmul.f32 %v752, %v819
        %v851 = vmul.f32 %v754, %v820
        %v852 = vmul.f32 %v756, %v820
        %v853 = vpack.c.bf16 %v346, %v343
        %v854 = vpack.c.bf16 %v372, %v369
        %v855 = vpack.c.bf16 %v823, %v821
        %v856 = vpack.c.bf16 %v824, %v822
        %v857 = vpack.c.bf16 %v827, %v825
        %v858 = vpack.c.bf16 %v828, %v826
        %v859 = vpack.c.bf16 %v831, %v829
        %v860 = vpack.c.bf16 %v832, %v830
        %v861 = vpack.c.bf16 %v835, %v833
        %v862 = vpack.c.bf16 %v836, %v834
        %v863 = vpack.c.bf16 %v839, %v837
        %v864 = vpack.c.bf16 %v840, %v838
        %v865 = vpack.c.bf16 %v843, %v841
        %v866 = vpack.c.bf16 %v844, %v842
        %v867 = vpack.c.bf16 %v847, %v845
        %v868 = vpack.c.bf16 %v848, %v846
        %v869 = vpack.c.bf16 %v851, %v849
        %v870 = vpack.c.bf16 %v852, %v850
        %871 = vmatpush.bf16.xpose.msra.mxu0 %v869
        %872 = vmatpush.bf16.xpose.msra.mxu0 %v867
        %873 = vmatpush.bf16.xpose.msra.mxu0 %v865
        %874 = vmatpush.bf16.xpose.msra.mxu0 %v863
        %875 = vmatpush.bf16.xpose.msra.mxu0 %v861
        %876 = vmatpush.bf16.xpose.msra.mxu0 %v859
        %877 = vmatpush.bf16.xpose.msra.mxu0 %v857
        %878 = vmatpush.bf16.xpose.msra.mxu0 %v855
        %879 = vmatmul.bf16.gmra.mxu0 %v853
        %v880 = vpop.f32.mrf.mxu0
        %v881 = vadd.f32 0.0, %v880
        %v882 = vpop.f32.mrf.mxu0
        %v883 = vadd.f32 0.0, %v882
        %884 = vdwg.mxu0
        %885 = vmatpush.bf16.xpose.msra.mxu0 %v870
        %886 = vmatpush.bf16.xpose.msra.mxu0 %v868
        %887 = vmatpush.bf16.xpose.msra.mxu0 %v866
        %888 = vmatpush.bf16.xpose.msra.mxu0 %v864
        %889 = vmatpush.bf16.xpose.msra.mxu0 %v862
        %890 = vmatpush.bf16.xpose.msra.mxu0 %v860
        %891 = vmatpush.bf16.xpose.msra.mxu0 %v858
        %892 = vmatpush.bf16.xpose.msra.mxu0 %v856
        %893 = vmatmul.bf16.gmra.mxu0 %v854
        %v894 = vpop.f32.mrf.mxu0
        %v895 = vadd.f32 %v881, %v894
        %v896 = vpop.f32.mrf.mxu0
        %v897 = vadd.f32 %v883, %v896
        %898 = vdwg.mxu0
        %s899 = sld [smem:[#allocation2]]
        %v900 = vstv %s899
        %v901 = vmul.f32 %v900, %v895
        %v902 = vmul.f32 %v900, %v897
        %v903 = vadd.f32 %v901, %v287
        %v904 = vadd.f32 %v902, %v288
        %905 = vst [vmem:[%s277] sm:$0xff] %v903
        %906 = vst [vmem:[%s277 + $0x8] sm:$0xff] %v904
        %s907 = sand.u32 %s162, 1
        %s908 = scalar_lea.sflag [#allocation5], %s907
        %s909 = sand.u32 %s162, 1
        %s910 = smul.addr %s909, 16
        %s911 = scalar_lea.vmem [#allocation6], %s910
        // Predicated region
        $region45: #{tpu_custom_call.1} parent=39 // pred_check
          %p912 = pneg %p172
        $region46: #{tpu_custom_call.1} parent=39 // pred_check_branch
          %914 = sbr.rel (%p912) target = $region48
        $region47: #{tpu_custom_call.1} parent=39 // pred_region
          %916 = vsyncadd %s908, 0
          %s917 = smul.addr %s27, 4
          %s918 = sadd.s32 %s28, %s917
          %s919 = smul.addr %s918, 8
          %s920 = scalar_lea.hbm %s5, %s919
          %s921 = sshll.u32 %s911, 4
          %s922 = int_to_ptr.vmem [resolvable:$true] %s921
          %s923 = sshll.u32 %s920, 4
          %s924 = int_to_ptr.hbm [resolvable:$true] %s923
          %929 = dma.vmem_to_hbm [thread:$0]  %s922, 256, %s924, %s908, 128, 256, 8
        $region48: #{tpu_custom_call.1} parent=39 // pred_fallthru
          _
      $region40: #{tpu_custom_call.1} parent=5 // pred_fallthru
        _
      %p930 = scmp.le.s32.totalorder 2, %s18
      // Predicated region
      $region49: #{tpu_custom_call.1} parent=5 // pred_check
        %p931 = pneg %p930
      $region50: #{tpu_custom_call.1} parent=5 // pred_check_branch
        %933 = sbr.rel (%p931) target = $region52
      $region51: #{tpu_custom_call.1} parent=5 // pred_region
        %s934 = ssub.s32 %s18, 2
        // Predicated region
        $region53: #{tpu_custom_call.1} parent=51 // pred_check
          %p935 = pneg %p178
        $region54: #{tpu_custom_call.1} parent=51 // pred_check_branch
          %937 = sbr.rel (%p935) target = $region56
        $region55: #{tpu_custom_call.1} parent=51 // pred_region
          %s938 = sand.u32 %s163, 1
          %s939 = scalar_lea.sflag [#allocation5], %s938
          %s940 = sand.u32 %s163, 1
          %s941 = smul.addr %s940, 16
          %s942 = scalar_lea.vmem [#allocation6], %s941
          %944 = dma.done %s939, 256
        $region56: #{tpu_custom_call.1} parent=51 // pred_fallthru
          _
      $region52: #{tpu_custom_call.1} parent=5 // pred_fallthru
        _
    $region6: #{tpu_custom_call.1} parent=1 // loop_footer
      %s22 = sadd.s32 1, %s18
    $region7: #{tpu_custom_call.1} parent=1 // loop_footer_branch
      %17 = sbr.rel target = $region3
    $region8: #{tpu_custom_call.1} parent=1 // loop_exit
      _
    %945 = vsyncpa [#allocation4], 1
    %s946 = scalar_lea.sflag [#allocation4], 1
    %947 = vsyncpa %s946, 1
    %948 = vsyncpa [#allocation5], 1
    %s949 = scalar_lea.sflag [#allocation5], 1
    %950 = vsyncpa %s949, 1

</llo_original>
